<compile_context>
chip_gen: v7x
topology: tpu7x:2x2x1
jax: 0.10.0
libtpu: 0.0.40
codegen_flags: <defaults>
</compile_context>

<pallas_src>
import functools

import jax
import jax.numpy as jnp
from jax.experimental import pallas as pl
from jax.experimental.pallas import tpu as pltpu


def _cdiv(a, b):
    return -(-a // b)


def _convbnrelu_kernel(x_ref, w_ref, scale_ref, shift_ref, o_ref):
    # x_ref:     (nb, C_in, t_hw)  NCHW-native tile: channels on sublanes, pixels on lanes
    # w_ref:     (C_out, C_in)     raw 1x1 conv weight (activation dtype)
    # scale_ref: (C_out, 1) f32    gamma / sqrt(running_var + eps)
    # shift_ref: (C_out, 1) f32    beta - running_mean * scale
    # o_ref:     (nb, C_out, t_hw)
    w = w_ref[...]
    scale = scale_ref[...]
    shift = shift_ref[...]
    for b in range(x_ref.shape[0]):  # nb is static and small (<= 4): unrolled
        y = jnp.dot(w, x_ref[b], preferred_element_type=jnp.float32)
        o_ref[b] = jnp.maximum(y * scale + shift, 0.0).astype(o_ref.dtype)


def _vmem_budget():
    """Per-generation (tile budget, vmem_limit clamp) in bytes."""
    try:
        cap = int(getattr(pltpu.get_tpu_info(), "vmem_capacity_bytes", 64 << 20))
    except Exception:
        cap = 64 << 20  # conservative fallback: v7x per-TC size
    if cap >= (96 << 20):            # v5e / v6e: 128 MiB physical VMEM
        return 32 << 20, 96 << 20
    return 20 << 20, 40 << 20        # v7x: 64 MiB per TensorCore


def _pick_tiling(N, HW, c_in, c_out, itemsize, budget_bytes, max_tile=4096):
    """Choose (nb, t_hw): batch-pack factor and lane-dense spatial tile."""
    def step_bytes(nb, t):
        io = 2 * nb * (c_in + c_out) * t * itemsize   # double-buffered x + out
        acc = 2 * c_out * t * 4                       # f32 dot result + epilogue temp
        return io + acc

    # 1) largest spatial tile fitting the budget (full row is always a legal block)
    if HW <= max_tile and step_bytes(1, HW) <= budget_bytes:
        t_hw = HW
    else:
        t_hw = max((min(max_tile, HW) // 128) * 128, 128)
        while t_hw > 128 and step_bytes(1, t_hw) > budget_bytes:
            t_hw -= 128

    # 2) dual-TC (v7x) balance: guarantee >= 2 grid programs when possible
    if N * _cdiv(HW, t_hw) < 2 and HW >= 256:
        t_hw = max((((HW + 1) // 2) // 128) * 128, 128)

    hw_tiles = _cdiv(HW, t_hw)

    # 3) pack several batch elements per step on small feature maps (amortize
    #    per-step pipeline overhead), without dropping below 2 grid programs.
    nb = 1
    for cand in (4, 2):
        if (cand <= N and N % cand == 0
                and step_bytes(cand, t_hw) <= budget_bytes
                and (N // cand) * hw_tiles >= 2):
            nb = cand
            break
    return nb, t_hw


@functools.partial(jax.jit, static_argnames=("eps", "single_buffer_consts",
                                             "budget_bytes", "limit_clamp"))
def _convbnrelu_impl(x_nchw, weight, gamma, beta, running_mean, running_var,
                     eps, single_buffer_consts, budget_bytes, limit_clamp):
    N, C_in, H, W = x_nchw.shape
    C_out = weight.shape[0]
    HW = H * W
    itemsize = jnp.dtype(x_nchw.dtype).itemsize

    # Eval-mode BatchNorm parameters kept in f32; applied in the kernel epilogue.
    scale = (gamma / jnp.sqrt(running_var + eps)).astype(jnp.float32)
    shift2 = (beta - running_mean * scale).astype(jnp.float32).reshape(C_out, 1)
    scale2 = scale.reshape(C_out, 1)
    w2 = weight.reshape(C_out, C_in).astype(x_nchw.dtype)

    # Free reshape: stay NCHW-native, pixels become the lane axis.
    x3 = x_nchw.reshape(N, C_in, HW)

    nb, t_hw = _pick_tiling(N, HW, C_in, C_out, itemsize, budget_bytes)
    grid = (N // nb, _cdiv(HW, t_hw))

    # VMEM estimate: double-buffered x/out + f32 accumulator + constants.
    const_bufs = 1 if single_buffer_consts else 2
    step_need = 2 * nb * (C_in + C_out) * t_hw * itemsize + 2 * C_out * t_hw * 4
    const_need = const_bufs * (C_out * C_in * itemsize + 2 * C_out * 4)
    vmem_limit = min(max(int((step_need + const_need) * 1.25) + (2 << 20), 16 << 20),
                     limit_clamp)

    const_mode = dict(pipeline_mode=pl.Buffered(1)) if single_buffer_consts else {}

    in_specs = [
        pl.BlockSpec((nb, C_in, t_hw), lambda n, j: (n, 0, j)),
        pl.BlockSpec((C_out, C_in), lambda n, j: (0, 0), **const_mode),
        pl.BlockSpec((C_out, 1), lambda n, j: (0, 0), **const_mode),
        pl.BlockSpec((C_out, 1), lambda n, j: (0, 0), **const_mode),
    ]

    out3 = pl.pallas_call(
        _convbnrelu_kernel,
        out_shape=jax.ShapeDtypeStruct((N, C_out, HW), x_nchw.dtype),
        grid_spec=pltpu.PrefetchScalarGridSpec(
            num_scalar_prefetch=0,
            grid=grid,
            in_specs=in_specs,
            out_specs=pl.BlockSpec((nb, C_out, t_hw), lambda n, j: (n, 0, j)),
        ),
        compiler_params=pltpu.CompilerParams(
            dimension_semantics=("parallel", "parallel"),
            vmem_limit_bytes=vmem_limit),
    )(x3, w2, scale2, shift2)

    return out3.reshape(N, C_out, H, W)


_HAS_BUFFERED = hasattr(pl, "Buffered")


def convbnrelu_forward(x_nchw, weight, gamma, beta, running_mean, running_var,
                       eps=1e-5):
    """x_nchw: (N, C_in, H, W); weight: (C_out, C_in, 1, 1) [PyTorch layout]."""
    budget_bytes, limit_clamp = _vmem_budget()
    args = (x_nchw, weight, gamma, beta, running_mean, running_var)
    if _HAS_BUFFERED:
        try:
            return _convbnrelu_impl(*args, eps=eps, single_buffer_consts=True,
                                    budget_bytes=budget_bytes,
                                    limit_clamp=limit_clamp)
        except Exception:
            pass  # pipeline_mode not supported by this jax build: fall back
    return _convbnrelu_impl(*args, eps=eps, single_buffer_consts=False,
                            budget_bytes=budget_bytes, limit_clamp=limit_clamp)


def _reference(x_nchw, weight, gamma, beta, running_mean, running_var, eps=1e-5):
    # Pure-JAX reference: 1x1 conv + eval BN + ReLU.
    x = jnp.einsum("nchw,oc->nohw", x_nchw, weight.reshape(weight.shape[0], -1))
    scale = (gamma / jnp.sqrt(running_var + eps)).reshape(1, -1, 1, 1)
    shift = (beta - running_mean * gamma / jnp.sqrt(running_var + eps)).reshape(1, -1, 1, 1)
    return jnp.maximum(x * scale + shift, 0.0)


if __name__ == "__main__":
    key = jax.random.PRNGKey(0)
    k_x, k_w, k_g, k_b, k_m, k_v = jax.random.split(key, 6)

    N, C_in, C_out, H, W = 2, 4, 8, 16, 16

    x = jax.random.normal(k_x, (N, C_in, H, W), dtype=jnp.float32)
    weight = jax.random.normal(k_w, (C_out, C_in, 1, 1), dtype=jnp.float32) * (1.0 / C_in) ** 0.5
    gamma = 1.0 + 0.1 * jax.random.normal(k_g, (C_out,), dtype=jnp.float32)
    beta = 0.1 * jax.random.normal(k_b, (C_out,), dtype=jnp.float32)
    running_mean = 0.1 * jax.random.normal(k_m, (C_out,), dtype=jnp.float32)
    running_var = jnp.abs(1.0 + 0.1 * jax.random.normal(k_v, (C_out,), dtype=jnp.float32))

    out = convbnrelu_forward(x, weight, gamma, beta, running_mean, running_var)
    out = jax.block_until_ready(out)

    ref = _reference(x, weight, gamma, beta, running_mean, running_var)
    assert out.shape == (N, C_out, H, W), out.shape
    assert jnp.allclose(out, ref, atol=1e-4, rtol=1e-4), float(jnp.max(jnp.abs(out - ref)))

    print("KERNEL_OK")
</pallas_src>

<mosaic_0001>
module attributes {stable_mosaic.version = 11 : i64} {
  func.func @_convbnrelu_kernel(%arg0: i32, %arg1: i32, %arg2: memref<1x4x256xf32, #tpu.memory_space<vmem>>, %arg3: memref<8x4xf32, #tpu.memory_space<vmem>>, %arg4: memref<8x1xf32, #tpu.memory_space<vmem>>, %arg5: memref<8x1xf32, #tpu.memory_space<vmem>>, %arg6: memref<1x8x256xf32, #tpu.memory_space<vmem>>) attributes {dimension_semantics = [#tpu.dimension_semantics<parallel>, #tpu.dimension_semantics<parallel>], iteration_bounds = array<i64: 2, 1>, scalar_prefetch = 0 : i64, scratch_operands = 0 : i64, tpu.core_type = #tpu.core_type<tc>, window_params = [{transform_indices = @transform_0, window_bounds = array<i64: 1, 4, 256>}, {pipeline_mode = #tpu.pipeline_mode<synchronous>, transform_indices = @transform_1, window_bounds = array<i64: 8, 4>}, {pipeline_mode = #tpu.pipeline_mode<synchronous>, transform_indices = @transform_2, window_bounds = array<i64: 8, 1>}, {pipeline_mode = #tpu.pipeline_mode<synchronous>, transform_indices = @transform_3, window_bounds = array<i64: 8, 1>}, {transform_indices = @transform_4, window_bounds = array<i64: 1, 8, 256>}]} {
    %c0 = arith.constant 0 : index
    %c0_0 = arith.constant 0 : index
    %0 = vector.load %arg3[%c0, %c0_0] : memref<8x4xf32, #tpu.memory_space<vmem>>, vector<8x4xf32>
    %c0_1 = arith.constant 0 : index
    %c0_2 = arith.constant 0 : index
    %1 = vector.load %arg4[%c0_1, %c0_2] : memref<8x1xf32, #tpu.memory_space<vmem>>, vector<8x1xf32>
    %c0_3 = arith.constant 0 : index
    %c0_4 = arith.constant 0 : index
    %2 = vector.load %arg5[%c0_3, %c0_4] : memref<8x1xf32, #tpu.memory_space<vmem>>, vector<8x1xf32>
    %c0_5 = arith.constant 0 : index
    %c0_6 = arith.constant 0 : index
    %c0_7 = arith.constant 0 : index
    %3 = vector.load %arg2[%c0_5, %c0_6, %c0_7] : memref<1x4x256xf32, #tpu.memory_space<vmem>>, vector<1x4x256xf32>
    %4 = vector.shape_cast %3 : vector<1x4x256xf32> to vector<4x256xf32>
    %cst = arith.constant dense<0.000000e+00> : vector<8x256xf32>
    %5 = tpu.matmul %0, %4, %cst {dimension_numbers = #tpu.dot_dimension_numbers<[1], [0], [0], [1], [0, 0, 1, 1], [], []>} : vector<8x4xf32>, vector<4x256xf32>, vector<8x256xf32> -> vector<8x256xf32>
    %6 = vector.broadcast %1 : vector<8x1xf32> to vector<8x256xf32>
    %7 = arith.mulf %5, %6 : vector<8x256xf32>
    %8 = vector.broadcast %2 : vector<8x1xf32> to vector<8x256xf32>
    %9 = arith.addf %7, %8 : vector<8x256xf32>
    %cst_8 = arith.constant 0.000000e+00 : f32
    %10 = vector.broadcast %cst_8 : f32 to vector<8x256xf32>
    %11 = arith.maximumf %9, %10 : vector<8x256xf32>
    %c0_9 = arith.constant 0 : index
    %c0_10 = arith.constant 0 : index
    %c0_11 = arith.constant 0 : index
    %12 = vector.load %arg6[%c0_9, %c0_10, %c0_11] : memref<1x8x256xf32, #tpu.memory_space<vmem>>, vector<1x8x256xf32>
    %13 = vector.shape_cast %12 : vector<1x8x256xf32> to vector<8x256xf32>
    %14 = vector.shape_cast %11 : vector<8x256xf32> to vector<1x8x256xf32>
    tpu.vector_store %arg6[%c0_9, %c0_10, %c0_11], %14 {strides = array<i32>} : memref<1x8x256xf32, #tpu.memory_space<vmem>>, vector<1x8x256xf32>,
    return
  }
  func.func @transform_0(%arg0: i32, %arg1: i32) -> (i32, i32, i32) {
    %c0_i32 = arith.constant 0 : i32
    %c0_i32_0 = arith.constant 0 : i32
    return %arg0, %c0_i32, %arg1 : i32, i32, i32
  }
  func.func @transform_1(%arg0: i32, %arg1: i32) -> (i32, i32) {
    %c0_i32 = arith.constant 0 : i32
    %c0_i32_0 = arith.constant 0 : i32
    %c0_i32_1 = arith.constant 0 : i32
    return %c0_i32, %c0_i32_0 : i32, i32
  }
  func.func @transform_2(%arg0: i32, %arg1: i32) -> (i32, i32) {
    %c0_i32 = arith.constant 0 : i32
    %c0_i32_0 = arith.constant 0 : i32
    %c0_i32_1 = arith.constant 0 : i32
    return %c0_i32, %c0_i32_0 : i32, i32
  }
  func.func @transform_3(%arg0: i32, %arg1: i32) -> (i32, i32) {
    %c0_i32 = arith.constant 0 : i32
    %c0_i32_0 = arith.constant 0 : i32
    %c0_i32_1 = arith.constant 0 : i32
    return %c0_i32, %c0_i32_0 : i32, i32
  }
  func.func @transform_4(%arg0: i32, %arg1: i32) -> (i32, i32, i32) {
    %c0_i32 = arith.constant 0 : i32
    %c0_i32_0 = arith.constant 0 : i32
    return %arg0, %c0_i32, %arg1 : i32, i32, i32
  }
}

module attributes {stable_mosaic.version = 11 : i64} {
  func.func @_convbnrelu_kernel(%arg0: i32, %arg1: i32, %arg2: memref<1x4x256xf32, #tpu.memory_space<vmem>>, %arg3: memref<8x4xf32, #tpu.memory_space<vmem>>, %arg4: memref<8x1xf32, #tpu.memory_space<vmem>>, %arg5: memref<8x1xf32, #tpu.memory_space<vmem>>, %arg6: memref<1x8x256xf32, #tpu.memory_space<vmem>>) attributes {dimension_semantics = [#tpu.dimension_semantics<parallel>, #tpu.dimension_semantics<parallel>], iteration_bounds = array<i64: 2, 1>, scalar_prefetch = 0 : i64, scratch_operands = 0 : i64, tpu.core_type = #tpu.core_type<tc>, window_params = [{transform_indices = @transform_0, window_bounds = array<i64: 1, 4, 256>}, {pipeline_mode = #tpu.pipeline_mode<synchronous>, transform_indices = @transform_1, window_bounds = array<i64: 8, 4>}, {pipeline_mode = #tpu.pipeline_mode<synchronous>, transform_indices = @transform_2, window_bounds = array<i64: 8, 1>}, {pipeline_mode = #tpu.pipeline_mode<synchronous>, transform_indices = @transform_3, window_bounds = array<i64: 8, 1>}, {transform_indices = @transform_4, window_bounds = array<i64: 1, 8, 256>}]} {
    %c0 = arith.constant 0 : index
    %c0_0 = arith.constant 0 : index
    %0 = vector.load %arg3[%c0, %c0_0] : memref<8x4xf32, #tpu.memory_space<vmem>>, vector<8x4xf32>
    %c0_1 = arith.constant 0 : index
    %c0_2 = arith.constant 0 : index
    %1 = vector.load %arg4[%c0_1, %c0_2] : memref<8x1xf32, #tpu.memory_space<vmem>>, vector<8x1xf32>
    %c0_3 = arith.constant 0 : index
    %c0_4 = arith.constant 0 : index
    %2 = vector.load %arg5[%c0_3, %c0_4] : memref<8x1xf32, #tpu.memory_space<vmem>>, vector<8x1xf32>
    %c0_5 = arith.constant 0 : index
    %c0_6 = arith.constant 0 : index
    %c0_7 = arith.constant 0 : index
    %3 = vector.load %arg2[%c0_5, %c0_6, %c0_7] : memref<1x4x256xf32, #tpu.memory_space<vmem>>, vector<1x4x256xf32>
    %4 = vector.shape_cast %3 : vector<1x4x256xf32> to vector<4x256xf32>
    %cst = arith.constant dense<0.000000e+00> : vector<8x256xf32>
    %5 = tpu.matmul %0, %4, %cst {dimension_numbers = #tpu.dot_dimension_numbers<[1], [0], [0], [1], [0, 0, 1, 1], [], []>} : vector<8x4xf32>, vector<4x256xf32>, vector<8x256xf32> -> vector<8x256xf32>
    %6 = vector.broadcast %1 : vector<8x1xf32> to vector<8x256xf32>
    %7 = arith.mulf %5, %6 : vector<8x256xf32>
    %8 = vector.broadcast %2 : vector<8x1xf32> to vector<8x256xf32>
    %9 = arith.addf %7, %8 : vector<8x256xf32>
    %cst_8 = arith.constant 0.000000e+00 : f32
    %10 = vector.broadcast %cst_8 : f32 to vector<8x256xf32>
    %11 = arith.maximumf %9, %10 : vector<8x256xf32>
    %c0_9 = arith.constant 0 : index
    %c0_10 = arith.constant 0 : index
    %c0_11 = arith.constant 0 : index
    %12 = vector.load %arg6[%c0_9, %c0_10, %c0_11] : memref<1x8x256xf32, #tpu.memory_space<vmem>>, vector<1x8x256xf32>
    %13 = vector.shape_cast %12 : vector<1x8x256xf32> to vector<8x256xf32>
    %14 = vector.shape_cast %11 : vector<8x256xf32> to vector<1x8x256xf32>
    tpu.vector_store %arg6[%c0_9, %c0_10, %c0_11], %14 {strides = array<i32>} : memref<1x8x256xf32, #tpu.memory_space<vmem>>, vector<1x8x256xf32>,
    return
  }
  func.func @transform_0(%arg0: i32, %arg1: i32) -> (i32, i32, i32) {
    %c0_i32 = arith.constant 0 : i32
    %c0_i32_0 = arith.constant 0 : i32
    return %arg0, %c0_i32, %arg1 : i32, i32, i32
  }
  func.func @transform_1(%arg0: i32, %arg1: i32) -> (i32, i32) {
    %c0_i32 = arith.constant 0 : i32
    %c0_i32_0 = arith.constant 0 : i32
    %c0_i32_1 = arith.constant 0 : i32
    return %c0_i32, %c0_i32_0 : i32, i32
  }
  func.func @transform_2(%arg0: i32, %arg1: i32) -> (i32, i32) {
    %c0_i32 = arith.constant 0 : i32
    %c0_i32_0 = arith.constant 0 : i32
    %c0_i32_1 = arith.constant 0 : i32
    return %c0_i32, %c0_i32_0 : i32, i32
  }
  func.func @transform_3(%arg0: i32, %arg1: i32) -> (i32, i32) {
    %c0_i32 = arith.constant 0 : i32
    %c0_i32_0 = arith.constant 0 : i32
    %c0_i32_1 = arith.constant 0 : i32
    return %c0_i32, %c0_i32_0 : i32, i32
  }
  func.func @transform_4(%arg0: i32, %arg1: i32) -> (i32, i32, i32) {
    %c0_i32 = arith.constant 0 : i32
    %c0_i32_0 = arith.constant 0 : i32
    return %arg0, %c0_i32, %arg1 : i32, i32, i32
  }
}

</mosaic_0001>

<llo_original>
// kernel: _convbnrelu_impl.1
$region0: #{_convbnrelu_impl.1}
  #allocation0 [shape = 'u32[]', space=smem, size = 0x4, offset = 0x4, fixed_abs, tag = 'smem constant byte address 0x4 - core index']
  #allocation1 [shape = 'u32[144,128]{1,0:T(1,128)}', space=vmem, size = 0x12000, scoped, tag = 'internal scratch']
  %s0 = inlined_call_operand.vmem [shape: f32[2,4,256], index: 0, kind: input, shape index: {}]
  %s1 = inlined_call_operand.vmem [shape: f32[8,4], index: 1, kind: input, shape index: {}]
  %s2 = inlined_call_operand.vmem [shape: f32[8,1], index: 2, kind: input, shape index: {}]
  %s3 = inlined_call_operand.vmem [shape: f32[8,1], index: 3, kind: input, shape index: {}]
  %s4 = inlined_call_operand.vmem [shape: f32[2,8,256], index: 4, kind: output, shape index: {}]
  %s5 = sld [smem:[#allocation0]]
  $region49: #{_convbnrelu_impl.1} parent=0
    _
  %s7 = ssub.s32 1, %s5
  %s8 = scalar_select 0, %s7, %s5
  loop: start=0, step=1, limit=4
  $region2: #{_convbnrelu_impl.1} parent=0 // loop_pre_header
    _
  $region3: #{_convbnrelu_impl.1} parent=0 // loop_header
    %s10 = sphi 0, %s14
    %p11 = scmp.ge.s32.totalorder %s10, 4
    %s17 = sphi 0, %s29
    %s18 = sphi 0, %s25
    %s19 = sphi 0, %s17
    %s20 = sphi 0, %s18
    %s21 = sphi 0, %s19
    %s22 = sphi 0, %s20
    %s34 = sphi 0, %s36
    %s37 = sphi 0, %s34
    %s38 = sphi 0, %s37
    %s54 = sphi 0, %s38
    %s58 = sphi 0, %s58
    %s60 = sphi 0, %s58
    %s61 = sphi 0, %s60
    %s75 = sphi 0, %s61
    %s79 = sphi 0, %s79
    %s81 = sphi 0, %s79
    %s82 = sphi 0, %s81
    %s96 = sphi 0, %s82
    %s100 = sphi 0, %s100
    %s102 = sphi 0, %s100
    %s103 = sphi 0, %s102
    %s117 = sphi 0, %s103
    %s125 = sphi 0, %s127
    %s128 = sphi 0, %s125
    %s129 = sphi 0, %s128
    %s145 = sphi 0, %s129
  $region4: #{_convbnrelu_impl.1} parent=0 // loop_header_branch
    %13 = sbr.rel (%p11) target = $region8
  $region5: #{_convbnrelu_impl.1} parent=0 // loop_body
    %s15 = ssub.s32 %s10, 1
    %s16 = ssub.s32 %s10, 2
    %s23 = sadd.s32 1, %s18
    %p24 = scmp.ge.s32.totalorder %s23, 1
    %s25 = scalar_select %p24, 0, %s23
    %s26 = sadd.s32 1, %s17
    %s27 = scalar_select %p24, %s26, %s17
    %p28 = scmp.ge.s32.totalorder %s27, 2
    %s29 = scalar_select %p28, 0, %s27
    %s30 = ssub.s32 %s17, %s29
    %s31 = ssub.s32 %s18, %s25
    %s32 = sor.u32 %s30, %s31
    %p33 = scmp.eq.s32.totalorder %s32, 0
    %s35 = sadd.s32 %s34, 1
    %s36 = scalar_select %p33, %s34, %s35
    %p39 = pneg %p33
    %p40 = scmp.eq.s32.totalorder %s10, 1
    %p41 = por %p39, %p40
    %p42 = scmp.ne.s32.totalorder %s34, %s37
    %p43 = scmp.eq.s32.totalorder %s10, 0
    %p44 = por %p42, %p43
    %p45 = scmp.ne.s32.totalorder %s34, %s37
    %p46 = scmp.eq.s32.totalorder %s15, 1
    %p47 = por %p45, %p46
    %p48 = scmp.ne.s32.totalorder %s37, %s38
    %p49 = scmp.eq.s32.totalorder %s15, 0
    %p50 = por %p48, %p49
    %p51 = scmp.ne.s32.totalorder %s37, %s38
    %p52 = scmp.eq.s32.totalorder %s16, 1
    %p53 = por %p51, %p52
    %p55 = scmp.ne.s32.totalorder %s38, %s54
    %p56 = scmp.eq.s32.totalorder %s16, 0
    %p57 = por %p55, %p56
    %s59 = sadd.s32 %s58, 1
    %p62 = scmp.eq.s32.totalorder %s10, 1
    %p63 = scmp.ne.s32.totalorder %s58, %s60
    %p64 = scmp.eq.s32.totalorder %s10, 0
    %p65 = por %p63, %p64
    %p66 = scmp.ne.s32.totalorder %s58, %s60
    %p67 = scmp.eq.s32.totalorder %s15, 1
    %p68 = por %p66, %p67
    %p69 = scmp.ne.s32.totalorder %s60, %s61
    %p70 = scmp.eq.s32.totalorder %s15, 0
    %p71 = por %p69, %p70
    %p72 = scmp.ne.s32.totalorder %s60, %s61
    %p73 = scmp.eq.s32.totalorder %s16, 1
    %p74 = por %p72, %p73
    %p76 = scmp.ne.s32.totalorder %s61, %s75
    %p77 = scmp.eq.s32.totalorder %s16, 0
    %p78 = por %p76, %p77
    %s80 = sadd.s32 %s79, 1
    %p83 = scmp.eq.s32.totalorder %s10, 1
    %p84 = scmp.ne.s32.totalorder %s79, %s81
    %p85 = scmp.eq.s32.totalorder %s10, 0
    %p86 = por %p84, %p85
    %p87 = scmp.ne.s32.totalorder %s79, %s81
    %p88 = scmp.eq.s32.totalorder %s15, 1
    %p89 = por %p87, %p88
    %p90 = scmp.ne.s32.totalorder %s81, %s82
    %p91 = scmp.eq.s32.totalorder %s15, 0
    %p92 = por %p90, %p91
    %p93 = scmp.ne.s32.totalorder %s81, %s82
    %p94 = scmp.eq.s32.totalorder %s16, 1
    %p95 = por %p93, %p94
    %p97 = scmp.ne.s32.totalorder %s82, %s96
    %p98 = scmp.eq.s32.totalorder %s16, 0
    %p99 = por %p97, %p98
    %s101 = sadd.s32 %s100, 1
    %p104 = scmp.eq.s32.totalorder %s10, 1
    %p105 = scmp.ne.s32.totalorder %s100, %s102
    %p106 = scmp.eq.s32.totalorder %s10, 0
    %p107 = por %p105, %p106
    %p108 = scmp.ne.s32.totalorder %s100, %s102
    %p109 = scmp.eq.s32.totalorder %s15, 1
    %p110 = por %p108, %p109
    %p111 = scmp.ne.s32.totalorder %s102, %s103
    %p112 = scmp.eq.s32.totalorder %s15, 0
    %p113 = por %p111, %p112
    %p114 = scmp.ne.s32.totalorder %s102, %s103
    %p115 = scmp.eq.s32.totalorder %s16, 1
    %p116 = por %p114, %p115
    %p118 = scmp.ne.s32.totalorder %s103, %s117
    %p119 = scmp.eq.s32.totalorder %s16, 0
    %p120 = por %p118, %p119
    %s121 = ssub.s32 %s17, %s29
    %s122 = ssub.s32 %s18, %s25
    %s123 = sor.u32 %s121, %s122
    %p124 = scmp.eq.s32.totalorder %s123, 0
    %s126 = sadd.s32 %s125, 1
    %s127 = scalar_select %p124, %s125, %s126
    %p130 = pneg %p124
    %p131 = scmp.eq.s32.totalorder %s10, 1
    %p132 = por %p130, %p131
    %p133 = scmp.ne.s32.totalorder %s125, %s128
    %p134 = scmp.eq.s32.totalorder %s10, 0
    %p135 = por %p133, %p134
    %p136 = scmp.ne.s32.totalorder %s125, %s128
    %p137 = scmp.eq.s32.totalorder %s15, 1
    %p138 = por %p136, %p137
    %p139 = scmp.ne.s32.totalorder %s128, %s129
    %p140 = scmp.eq.s32.totalorder %s15, 0
    %p141 = por %p139, %p140
    %p142 = scmp.ne.s32.totalorder %s128, %s129
    %p143 = scmp.eq.s32.totalorder %s16, 1
    %p144 = por %p142, %p143
    %p146 = scmp.ne.s32.totalorder %s129, %s145
    %p147 = scmp.eq.s32.totalorder %s16, 0
    %p148 = por %p146, %p147
    %p149 = scmp.le.s32.totalorder 1, %s10
    %p150 = scmp.lt.s32.totalorder %s10, 3
    %p151 = pnand %p149, %p150
    %p152 = pneg %p151
    // Predicated region
    $region9: #{_convbnrelu_impl.1} parent=5 // pred_check
      _
    $region10: #{_convbnrelu_impl.1} parent=5 // pred_check_branch
      %154 = sbr.rel (%p151) target = $region12
    $region11: #{_convbnrelu_impl.1} parent=5 // pred_region
      %s155 = ssub.s32 %s10, 1
      // Predicated region
      $region13: #{_convbnrelu_impl.1} parent=11 // pred_check
        %p156 = pneg %p71
      $region14: #{_convbnrelu_impl.1} parent=11 // pred_check_branch
        %158 = sbr.rel (%p156) target = $region16
      $region15: #{_convbnrelu_impl.1} parent=11 // pred_region
        _
      $region16: #{_convbnrelu_impl.1} parent=11 // pred_fallthru
        _
      // Predicated region
      $region17: #{_convbnrelu_impl.1} parent=11 // pred_check
        %p159 = pneg %p92
      $region18: #{_convbnrelu_impl.1} parent=11 // pred_check_branch
        %161 = sbr.rel (%p159) target = $region20
      $region19: #{_convbnrelu_impl.1} parent=11 // pred_region
        _
      $region20: #{_convbnrelu_impl.1} parent=11 // pred_fallthru
        _
      // Predicated region
      $region21: #{_convbnrelu_impl.1} parent=11 // pred_check
        %p162 = pneg %p113
      $region22: #{_convbnrelu_impl.1} parent=11 // pred_check_branch
        %164 = sbr.rel (%p162) target = $region24
      $region23: #{_convbnrelu_impl.1} parent=11 // pred_region
        _
      $region24: #{_convbnrelu_impl.1} parent=11 // pred_fallthru
        _
    $region12: #{_convbnrelu_impl.1} parent=5 // pred_fallthru
      _
    %p165 = scmp.lt.s32.totalorder %s10, 2
    // Predicated region
    $region25: #{_convbnrelu_impl.1} parent=5 // pred_check
      %p166 = pneg %p165
    $region26: #{_convbnrelu_impl.1} parent=5 // pred_check_branch
      %168 = sbr.rel (%p166) target = $region28
    $region27: #{_convbnrelu_impl.1} parent=5 // pred_region
      // Predicated region
      $region29: #{_convbnrelu_impl.1} parent=27 // pred_check
        %p169 = pneg %p44
      $region30: #{_convbnrelu_impl.1} parent=27 // pred_check_branch
        %171 = sbr.rel (%p169) target = $region32
      $region31: #{_convbnrelu_impl.1} parent=27 // pred_region
        %s172 = smul.u32 2, %s18
        %p173 = scmp.lt.s32.totalorder %s17, 1
        %s174 = scalar_select %p173, %s17, 1
        %p175 = scmp.lt.s32.totalorder %s172, 1
        %s176 = scalar_select %p175, %s172, 1
        %s177 = smul.addr %s174, 2
        %s178 = sadd.s32 %s176, %s177
        %s179 = smul.addr %s178, 4
        %s180 = scalar_lea.vmem %s0, %s179
        %s181 = smul.u32 2, %s18
      $region32: #{_convbnrelu_impl.1} parent=27 // pred_fallthru
        _
    $region28: #{_convbnrelu_impl.1} parent=5 // pred_fallthru
      _
    %p182 = scmp.le.s32.totalorder 1, %s10
    %p183 = scmp.lt.s32.totalorder %s10, 3
    %p184 = pnand %p182, %p183
    %p185 = pneg %p184
    // Predicated region
    $region33: #{_convbnrelu_impl.1} parent=5 // pred_check
      _
    $region34: #{_convbnrelu_impl.1} parent=5 // pred_check_branch
      %187 = sbr.rel (%p184) target = $region36
    $region35: #{_convbnrelu_impl.1} parent=5 // pred_region
      %s188 = ssub.s32 %s10, 1
      %s189 = smul.u32 2, %s20
      %p190 = scmp.lt.s32.totalorder %s19, 1
      %s191 = scalar_select %p190, %s19, 1
      %p192 = scmp.lt.s32.totalorder %s189, 1
      %s193 = scalar_select %p192, %s189, 1
      %s194 = smul.addr %s191, 2
      %s195 = sadd.s32 %s193, %s194
      %s196 = smul.addr %s195, 4
      %s197 = scalar_lea.vmem %s0, %s196
      %p198 = pneg %p50
      %p199 = pneg %p47
      %p200 = pneg %p71
      %p201 = pneg %p68
      %p202 = pneg %p92
      %p203 = pneg %p89
      %p204 = pneg %p113
      %p205 = pneg %p110
      %p206 = pneg %p141
      %p207 = pneg %p138
      %s208 = smul.u32 2, %s20
      %p209 = scmp.lt.s32.totalorder %s19, 1
      %s210 = scalar_select %p209, %s19, 1
      %p211 = scmp.lt.s32.totalorder %s208, 1
      %s212 = scalar_select %p211, %s208, 1
      %s213 = smul.addr %s210, 2
      %s214 = sadd.s32 %s212, %s213
      %s215 = smul.addr %s214, 8
      %s216 = scalar_lea.vmem %s4, %s215
      %s217 = smul.u32 2, %s20
      %p218 = scmp.lt.s32.totalorder %s19, 1
      %s219 = scalar_select %p218, %s19, 1
      %p220 = scmp.lt.s32.totalorder %s217, 1
      %s221 = scalar_select %p220, %s217, 1
      %s222 = smul.addr %s219, 2
      %s223 = sadd.s32 %s221, %s222
      %s224 = smul.addr %s223, 4
      %s225 = scalar_lea.vmem %s0, %s224
      %s226 = smul.u32 2, %s20
      %s227 = smul.u32 2, %s20
      %p228 = scmp.lt.s32.totalorder %s19, 1
      %s229 = scalar_select %p228, %s19, 1
      %p230 = scmp.lt.s32.totalorder %s227, 1
      %s231 = scalar_select %p230, %s227, 1
      %s232 = smul.addr %s229, 2
      %s233 = sadd.s32 %s231, %s232
      %s234 = smul.addr %s233, 8
      %s235 = scalar_lea.vmem %s4, %s234
      %s236 = smul.u32 2, %s20
      %v237 = vld [vmem:[%s1] sm:$0xff]
      %v238 = vld [vmem:[%s2] sm:$0xff]
      %v239 = vld [vmem:[%s3] sm:$0xff]
      %v240 = vld [vmem:[%s225] sm:$0xff]
      %v242 = vcombine.high %v240, %v240
      %vm243 = vcmask 31744
      %v245 = vsel %vm243, %v237, 0
      %vm247 = vcmask 1043456
      %v248 = vsel %vm247, %v240, 0
      %v250 = vsel %vm247, %v242, 0
      %252 = vmatprep.subr.mxu0 %v250
      %253 = vmatpush1.msra.mxu0 %v248
      %254 = vmatprep.subr.mxu0 0.0
      %255 = vmatpush1.msra.mxu0 0.0
      %256 = vmatprep.subr.mxu0 0.0
      %257 = vmatpush1.msra.mxu0 0.0
      %258 = vmatprep.subr.mxu0 0.0
      %259 = vmatpush1.msra.mxu0 0.0
      %260 = vmatprep.subr.mxu0 0.0
      %261 = vmatpush1.msra.mxu0 0.0
      %262 = vmatprep.subr.mxu0 0.0
      %263 = vmatpush1.msra.mxu0 0.0
      %264 = vmatprep.subr.mxu0 0.0
      %265 = vmatpush1.msra.mxu0 0.0
      %266 = vmatprep.subr.mxu0 0.0
      %267 = vmatpush1.msra.mxu0 0.0
      %268 = vmatprep.subr.mxu0 0.0
      %269 = vmatpush1.msra.mxu0 0.0
      %270 = vmatprep.subr.mxu0 0.0
      %271 = vmatpush1.msra.mxu0 0.0
      %272 = vmatprep.subr.mxu0 0.0
      %273 = vmatpush1.msra.mxu0 0.0
      %274 = vmatprep.subr.mxu0 0.0
      %275 = vmatpush1.msra.mxu0 0.0
      %276 = vmatprep.subr.mxu0 0.0
      %277 = vmatpush1.msra.mxu0 0.0
      %278 = vmatprep.subr.mxu0 0.0
      %279 = vmatpush1.msra.mxu0 0.0
      %280 = vmatprep.subr.mxu0 0.0
      %281 = vmatpush1.msra.mxu0 0.0
      %282 = vmatprep.subr.mxu0 0.0
      %283 = vmatpush1.msra.mxu0 0.0
      %284 = vmatprep.subr.mxu0 0.0
      %285 = vmatpush1.msra.mxu0 0.0
      %286 = vmatprep.subr.mxu0 0.0
      %287 = vmatpush1.msra.mxu0 0.0
      %288 = vmatprep.subr.mxu0 0.0
      %289 = vmatpush1.msra.mxu0 0.0
      %290 = vmatprep.subr.mxu0 0.0
      %291 = vmatpush1.msra.mxu0 0.0
      %292 = vmatprep.subr.mxu0 0.0
      %293 = vmatpush1.msra.mxu0 0.0
      %294 = vmatprep.subr.mxu0 0.0
      %295 = vmatpush1.msra.mxu0 0.0
      %296 = vmatprep.subr.mxu0 0.0
      %297 = vmatpush1.msra.mxu0 0.0
      %298 = vmatprep.subr.mxu0 0.0
      %299 = vmatpush1.msra.mxu0 0.0
      %300 = vmatprep.subr.mxu0 0.0
      %301 = vmatpush1.msra.mxu0 0.0
      %302 = vmatprep.subr.mxu0 0.0
      %303 = vmatpush1.msra.mxu0 0.0
      %304 = vmatprep.subr.mxu0 0.0
      %305 = vmatpush1.msra.mxu0 0.0
      %306 = vmatprep.subr.mxu0 0.0
      %307 = vmatpush1.msra.mxu0 0.0
      %308 = vmatprep.subr.mxu0 0.0
      %309 = vmatpush1.msra.mxu0 0.0
      %310 = vmatprep.subr.mxu0 0.0
      %311 = vmatpush1.msra.mxu0 0.0
      %312 = vmatprep.subr.mxu0 0.0
      %313 = vmatpush1.msra.mxu0 0.0
      %314 = vmatprep.subr.mxu0 0.0
      %315 = vmatpush1.msra.mxu0 0.0
      %316 = vmatprep.mubr.f32.mxu0 0.0
      %317 = vmatmul.mubr.f32.gmra.mrb[0].mxu0 %v245
      %v318 = vpop.f32.mrb[0].mxu0
      %v319 = vadd.f32 0.0, %v318
      %v320 = vpop.f32.mrb[0].mxu0
      %v321 = vadd.f32 0.0, %v320
      %322 = vdwg.mxu0
      %324 = vset.pattern.permute.xlu0 0
      %325 = vperm.xlu0 %324, %v238
      %v326 = vpop.permute.xlu0 %325
      %v328 = vmul.f32 %v319, %v326
      %v329 = vmul.f32 %v321, %v326
      %331 = vset.pattern.permute.xlu0 0
      %332 = vperm.xlu0 %331, %v239
      %v333 = vpop.permute.xlu0 %332
      %v335 = vadd.f32 %v328, %v333
      %v336 = vadd.f32 %v329, %v333
      %v337 = vmax.f32 %v335, 0.0
      %v338 = vmax.f32 %v336, 0.0
      %339 = vst [vmem:[%s235] sm:$0xff] %v337
      %340 = vst [vmem:[%s235 + $0x8] sm:$0xff] %v338
      %s341 = smul.u32 2, %s20
      %p342 = scmp.lt.s32.totalorder %s19, 1
      %s343 = scalar_select %p342, %s19, 1
      %p344 = scmp.lt.s32.totalorder %s341, 1
      %s345 = scalar_select %p344, %s341, 1
      %s346 = smul.addr %s343, 2
      %s347 = sadd.s32 %s345, %s346
      %s348 = smul.addr %s347, 8
      %s349 = scalar_lea.vmem %s4, %s348
      // Predicated region
      $region37: #{_convbnrelu_impl.1} parent=35 // pred_check
        %p350 = pneg %p138
      $region38: #{_convbnrelu_impl.1} parent=35 // pred_check_branch
        %352 = sbr.rel (%p350) target = $region40
      $region39: #{_convbnrelu_impl.1} parent=35 // pred_region
        %s353 = smul.u32 2, %s20
      $region40: #{_convbnrelu_impl.1} parent=35 // pred_fallthru
        _
    $region36: #{_convbnrelu_impl.1} parent=5 // pred_fallthru
      _
    %p354 = scmp.le.s32.totalorder 2, %s10
    // Predicated region
    $region41: #{_convbnrelu_impl.1} parent=5 // pred_check
      %p355 = pneg %p354
    $region42: #{_convbnrelu_impl.1} parent=5 // pred_check_branch
      %357 = sbr.rel (%p355) target = $region44
    $region43: #{_convbnrelu_impl.1} parent=5 // pred_region
      %s358 = ssub.s32 %s10, 2
      // Predicated region
      $region45: #{_convbnrelu_impl.1} parent=43 // pred_check
        %p359 = pneg %p144
      $region46: #{_convbnrelu_impl.1} parent=43 // pred_check_branch
        %361 = sbr.rel (%p359) target = $region48
      $region47: #{_convbnrelu_impl.1} parent=43 // pred_region
        %s362 = smul.u32 2, %s22
        %p363 = scmp.lt.s32.totalorder %s21, 1
        %s364 = scalar_select %p363, %s21, 1
        %p365 = scmp.lt.s32.totalorder %s362, 1
        %s366 = scalar_select %p365, %s362, 1
        %s367 = smul.addr %s364, 2
        %s368 = sadd.s32 %s366, %s367
        %s369 = smul.addr %s368, 8
        %s370 = scalar_lea.vmem %s4, %s369
      $region48: #{_convbnrelu_impl.1} parent=43 // pred_fallthru
        _
    $region44: #{_convbnrelu_impl.1} parent=5 // pred_fallthru
      _
  $region6: #{_convbnrelu_impl.1} parent=0 // loop_footer
    %s14 = sadd.s32 1, %s10
  $region7: #{_convbnrelu_impl.1} parent=0 // loop_footer_branch
    %9 = sbr.rel target = $region3
  $region8: #{_convbnrelu_impl.1} parent=0 // loop_exit
    _

// kernel: _convbnrelu_impl.1
$region0: #{_convbnrelu_impl.1}
  #allocation0 [shape = 'u32[]', space=smem, size = 0x4, offset = 0x4, fixed_abs, tag = 'smem constant byte address 0x4 - core index']
  #allocation1 [shape = 'u32[144,128]{1,0:T(1,128)}', space=vmem, size = 0x12000, scoped, tag = 'internal scratch']
  %s0 = inlined_call_operand.vmem [shape: f32[2,4,256], index: 0, kind: input, shape index: {}]
  %s1 = inlined_call_operand.vmem [shape: f32[8,4], index: 1, kind: input, shape index: {}]
  %s2 = inlined_call_operand.vmem [shape: f32[8,1], index: 2, kind: input, shape index: {}]
  %s3 = inlined_call_operand.vmem [shape: f32[8,1], index: 3, kind: input, shape index: {}]
  %s4 = inlined_call_operand.vmem [shape: f32[2,8,256], index: 4, kind: output, shape index: {}]
  %s5 = sld [smem:[#allocation0]]
  $region49: #{_convbnrelu_impl.1} parent=0
    _
  %s7 = ssub.s32 1, %s5
  %s8 = scalar_select 0, %s7, %s5
  loop: start=0, step=1, limit=4
  $region2: #{_convbnrelu_impl.1} parent=0 // loop_pre_header
    _
  $region3: #{_convbnrelu_impl.1} parent=0 // loop_header
    %s10 = sphi 0, %s14
    %p11 = scmp.ge.s32.totalorder %s10, 4
    %s17 = sphi 0, %s29
    %s18 = sphi 0, %s25
    %s19 = sphi 0, %s17
    %s20 = sphi 0, %s18
    %s21 = sphi 0, %s19
    %s22 = sphi 0, %s20
    %s34 = sphi 0, %s36
    %s37 = sphi 0, %s34
    %s38 = sphi 0, %s37
    %s54 = sphi 0, %s38
    %s58 = sphi 0, %s58
    %s60 = sphi 0, %s58
    %s61 = sphi 0, %s60
    %s75 = sphi 0, %s61
    %s79 = sphi 0, %s79
    %s81 = sphi 0, %s79
    %s82 = sphi 0, %s81
    %s96 = sphi 0, %s82
    %s100 = sphi 0, %s100
    %s102 = sphi 0, %s100
    %s103 = sphi 0, %s102
    %s117 = sphi 0, %s103
    %s125 = sphi 0, %s127
    %s128 = sphi 0, %s125
    %s129 = sphi 0, %s128
    %s145 = sphi 0, %s129
  $region4: #{_convbnrelu_impl.1} parent=0 // loop_header_branch
    %13 = sbr.rel (%p11) target = $region8
  $region5: #{_convbnrelu_impl.1} parent=0 // loop_body
    %s15 = ssub.s32 %s10, 1
    %s16 = ssub.s32 %s10, 2
    %s23 = sadd.s32 1, %s18
    %p24 = scmp.ge.s32.totalorder %s23, 1
    %s25 = scalar_select %p24, 0, %s23
    %s26 = sadd.s32 1, %s17
    %s27 = scalar_select %p24, %s26, %s17
    %p28 = scmp.ge.s32.totalorder %s27, 2
    %s29 = scalar_select %p28, 0, %s27
    %s30 = ssub.s32 %s17, %s29
    %s31 = ssub.s32 %s18, %s25
    %s32 = sor.u32 %s30, %s31
    %p33 = scmp.eq.s32.totalorder %s32, 0
    %s35 = sadd.s32 %s34, 1
    %s36 = scalar_select %p33, %s34, %s35
    %p39 = pneg %p33
    %p40 = scmp.eq.s32.totalorder %s10, 1
    %p41 = por %p39, %p40
    %p42 = scmp.ne.s32.totalorder %s34, %s37
    %p43 = scmp.eq.s32.totalorder %s10, 0
    %p44 = por %p42, %p43
    %p45 = scmp.ne.s32.totalorder %s34, %s37
    %p46 = scmp.eq.s32.totalorder %s15, 1
    %p47 = por %p45, %p46
    %p48 = scmp.ne.s32.totalorder %s37, %s38
    %p49 = scmp.eq.s32.totalorder %s15, 0
    %p50 = por %p48, %p49
    %p51 = scmp.ne.s32.totalorder %s37, %s38
    %p52 = scmp.eq.s32.totalorder %s16, 1
    %p53 = por %p51, %p52
    %p55 = scmp.ne.s32.totalorder %s38, %s54
    %p56 = scmp.eq.s32.totalorder %s16, 0
    %p57 = por %p55, %p56
    %s59 = sadd.s32 %s58, 1
    %p62 = scmp.eq.s32.totalorder %s10, 1
    %p63 = scmp.ne.s32.totalorder %s58, %s60
    %p64 = scmp.eq.s32.totalorder %s10, 0
    %p65 = por %p63, %p64
    %p66 = scmp.ne.s32.totalorder %s58, %s60
    %p67 = scmp.eq.s32.totalorder %s15, 1
    %p68 = por %p66, %p67
    %p69 = scmp.ne.s32.totalorder %s60, %s61
    %p70 = scmp.eq.s32.totalorder %s15, 0
    %p71 = por %p69, %p70
    %p72 = scmp.ne.s32.totalorder %s60, %s61
    %p73 = scmp.eq.s32.totalorder %s16, 1
    %p74 = por %p72, %p73
    %p76 = scmp.ne.s32.totalorder %s61, %s75
    %p77 = scmp.eq.s32.totalorder %s16, 0
    %p78 = por %p76, %p77
    %s80 = sadd.s32 %s79, 1
    %p83 = scmp.eq.s32.totalorder %s10, 1
    %p84 = scmp.ne.s32.totalorder %s79, %s81
    %p85 = scmp.eq.s32.totalorder %s10, 0
    %p86 = por %p84, %p85
    %p87 = scmp.ne.s32.totalorder %s79, %s81
    %p88 = scmp.eq.s32.totalorder %s15, 1
    %p89 = por %p87, %p88
    %p90 = scmp.ne.s32.totalorder %s81, %s82
    %p91 = scmp.eq.s32.totalorder %s15, 0
    %p92 = por %p90, %p91
    %p93 = scmp.ne.s32.totalorder %s81, %s82
    %p94 = scmp.eq.s32.totalorder %s16, 1
    %p95 = por %p93, %p94
    %p97 = scmp.ne.s32.totalorder %s82, %s96
    %p98 = scmp.eq.s32.totalorder %s16, 0
    %p99 = por %p97, %p98
    %s101 = sadd.s32 %s100, 1
    %p104 = scmp.eq.s32.totalorder %s10, 1
    %p105 = scmp.ne.s32.totalorder %s100, %s102
    %p106 = scmp.eq.s32.totalorder %s10, 0
    %p107 = por %p105, %p106
    %p108 = scmp.ne.s32.totalorder %s100, %s102
    %p109 = scmp.eq.s32.totalorder %s15, 1
    %p110 = por %p108, %p109
    %p111 = scmp.ne.s32.totalorder %s102, %s103
    %p112 = scmp.eq.s32.totalorder %s15, 0
    %p113 = por %p111, %p112
    %p114 = scmp.ne.s32.totalorder %s102, %s103
    %p115 = scmp.eq.s32.totalorder %s16, 1
    %p116 = por %p114, %p115
    %p118 = scmp.ne.s32.totalorder %s103, %s117
    %p119 = scmp.eq.s32.totalorder %s16, 0
    %p120 = por %p118, %p119
    %s121 = ssub.s32 %s17, %s29
    %s122 = ssub.s32 %s18, %s25
    %s123 = sor.u32 %s121, %s122
    %p124 = scmp.eq.s32.totalorder %s123, 0
    %s126 = sadd.s32 %s125, 1
    %s127 = scalar_select %p124, %s125, %s126
    %p130 = pneg %p124
    %p131 = scmp.eq.s32.totalorder %s10, 1
    %p132 = por %p130, %p131
    %p133 = scmp.ne.s32.totalorder %s125, %s128
    %p134 = scmp.eq.s32.totalorder %s10, 0
    %p135 = por %p133, %p134
    %p136 = scmp.ne.s32.totalorder %s125, %s128
    %p137 = scmp.eq.s32.totalorder %s15, 1
    %p138 = por %p136, %p137
    %p139 = scmp.ne.s32.totalorder %s128, %s129
    %p140 = scmp.eq.s32.totalorder %s15, 0
    %p141 = por %p139, %p140
    %p142 = scmp.ne.s32.totalorder %s128, %s129
    %p143 = scmp.eq.s32.totalorder %s16, 1
    %p144 = por %p142, %p143
    %p146 = scmp.ne.s32.totalorder %s129, %s145
    %p147 = scmp.eq.s32.totalorder %s16, 0
    %p148 = por %p146, %p147
    %p149 = scmp.le.s32.totalorder 1, %s10
    %p150 = scmp.lt.s32.totalorder %s10, 3
    %p151 = pnand %p149, %p150
    %p152 = pneg %p151
    // Predicated region
    $region9: #{_convbnrelu_impl.1} parent=5 // pred_check
      _
    $region10: #{_convbnrelu_impl.1} parent=5 // pred_check_branch
      %154 = sbr.rel (%p151) target = $region12
    $region11: #{_convbnrelu_impl.1} parent=5 // pred_region
      %s155 = ssub.s32 %s10, 1
      // Predicated region
      $region13: #{_convbnrelu_impl.1} parent=11 // pred_check
        %p156 = pneg %p71
      $region14: #{_convbnrelu_impl.1} parent=11 // pred_check_branch
        %158 = sbr.rel (%p156) target = $region16
      $region15: #{_convbnrelu_impl.1} parent=11 // pred_region
        _
      $region16: #{_convbnrelu_impl.1} parent=11 // pred_fallthru
        _
      // Predicated region
      $region17: #{_convbnrelu_impl.1} parent=11 // pred_check
        %p159 = pneg %p92
      $region18: #{_convbnrelu_impl.1} parent=11 // pred_check_branch
        %161 = sbr.rel (%p159) target = $region20
      $region19: #{_convbnrelu_impl.1} parent=11 // pred_region
        _
      $region20: #{_convbnrelu_impl.1} parent=11 // pred_fallthru
        _
      // Predicated region
      $region21: #{_convbnrelu_impl.1} parent=11 // pred_check
        %p162 = pneg %p113
      $region22: #{_convbnrelu_impl.1} parent=11 // pred_check_branch
        %164 = sbr.rel (%p162) target = $region24
      $region23: #{_convbnrelu_impl.1} parent=11 // pred_region
        _
      $region24: #{_convbnrelu_impl.1} parent=11 // pred_fallthru
        _
    $region12: #{_convbnrelu_impl.1} parent=5 // pred_fallthru
      _
    %p165 = scmp.lt.s32.totalorder %s10, 2
    // Predicated region
    $region25: #{_convbnrelu_impl.1} parent=5 // pred_check
      %p166 = pneg %p165
    $region26: #{_convbnrelu_impl.1} parent=5 // pred_check_branch
      %168 = sbr.rel (%p166) target = $region28
    $region27: #{_convbnrelu_impl.1} parent=5 // pred_region
      // Predicated region
      $region29: #{_convbnrelu_impl.1} parent=27 // pred_check
        %p169 = pneg %p44
      $region30: #{_convbnrelu_impl.1} parent=27 // pred_check_branch
        %171 = sbr.rel (%p169) target = $region32
      $region31: #{_convbnrelu_impl.1} parent=27 // pred_region
        %s172 = smul.u32 2, %s18
        %p173 = scmp.lt.s32.totalorder %s17, 1
        %s174 = scalar_select %p173, %s17, 1
        %p175 = scmp.lt.s32.totalorder %s172, 1
        %s176 = scalar_select %p175, %s172, 1
        %s177 = smul.addr %s174, 2
        %s178 = sadd.s32 %s176, %s177
        %s179 = smul.addr %s178, 4
        %s180 = scalar_lea.vmem %s0, %s179
        %s181 = smul.u32 2, %s18
      $region32: #{_convbnrelu_impl.1} parent=27 // pred_fallthru
        _
    $region28: #{_convbnrelu_impl.1} parent=5 // pred_fallthru
      _
    %p182 = scmp.le.s32.totalorder 1, %s10
    %p183 = scmp.lt.s32.totalorder %s10, 3
    %p184 = pnand %p182, %p183
    %p185 = pneg %p184
    // Predicated region
    $region33: #{_convbnrelu_impl.1} parent=5 // pred_check
      _
    $region34: #{_convbnrelu_impl.1} parent=5 // pred_check_branch
      %187 = sbr.rel (%p184) target = $region36
    $region35: #{_convbnrelu_impl.1} parent=5 // pred_region
      %s188 = ssub.s32 %s10, 1
      %s189 = smul.u32 2, %s20
      %p190 = scmp.lt.s32.totalorder %s19, 1
      %s191 = scalar_select %p190, %s19, 1
      %p192 = scmp.lt.s32.totalorder %s189, 1
      %s193 = scalar_select %p192, %s189, 1
      %s194 = smul.addr %s191, 2
      %s195 = sadd.s32 %s193, %s194
      %s196 = smul.addr %s195, 4
      %s197 = scalar_lea.vmem %s0, %s196
      %p198 = pneg %p50
      %p199 = pneg %p47
      %p200 = pneg %p71
      %p201 = pneg %p68
      %p202 = pneg %p92
      %p203 = pneg %p89
      %p204 = pneg %p113
      %p205 = pneg %p110
      %p206 = pneg %p141
      %p207 = pneg %p138
      %s208 = smul.u32 2, %s20
      %p209 = scmp.lt.s32.totalorder %s19, 1
      %s210 = scalar_select %p209, %s19, 1
      %p211 = scmp.lt.s32.totalorder %s208, 1
      %s212 = scalar_select %p211, %s208, 1
      %s213 = smul.addr %s210, 2
      %s214 = sadd.s32 %s212, %s213
      %s215 = smul.addr %s214, 8
      %s216 = scalar_lea.vmem %s4, %s215
      %s217 = smul.u32 2, %s20
      %p218 = scmp.lt.s32.totalorder %s19, 1
      %s219 = scalar_select %p218, %s19, 1
      %p220 = scmp.lt.s32.totalorder %s217, 1
      %s221 = scalar_select %p220, %s217, 1
      %s222 = smul.addr %s219, 2
      %s223 = sadd.s32 %s221, %s222
      %s224 = smul.addr %s223, 4
      %s225 = scalar_lea.vmem %s0, %s224
      %s226 = smul.u32 2, %s20
      %s227 = smul.u32 2, %s20
      %p228 = scmp.lt.s32.totalorder %s19, 1
      %s229 = scalar_select %p228, %s19, 1
      %p230 = scmp.lt.s32.totalorder %s227, 1
      %s231 = scalar_select %p230, %s227, 1
      %s232 = smul.addr %s229, 2
      %s233 = sadd.s32 %s231, %s232
      %s234 = smul.addr %s233, 8
      %s235 = scalar_lea.vmem %s4, %s234
      %s236 = smul.u32 2, %s20
      %v237 = vld [vmem:[%s1] sm:$0xff]
      %v238 = vld [vmem:[%s2] sm:$0xff]
      %v239 = vld [vmem:[%s3] sm:$0xff]
      %v240 = vld [vmem:[%s225] sm:$0xff]
      %v242 = vcombine.high %v240, %v240
      %vm243 = vcmask 31744
      %v245 = vsel %vm243, %v237, 0
      %vm247 = vcmask 1043456
      %v248 = vsel %vm247, %v240, 0
      %v250 = vsel %vm247, %v242, 0
      %252 = vmatprep.subr.mxu0 %v250
      %253 = vmatpush1.msra.mxu0 %v248
      %254 = vmatprep.subr.mxu0 0.0
      %255 = vmatpush1.msra.mxu0 0.0
      %256 = vmatprep.subr.mxu0 0.0
      %257 = vmatpush1.msra.mxu0 0.0
      %258 = vmatprep.subr.mxu0 0.0
      %259 = vmatpush1.msra.mxu0 0.0
      %260 = vmatprep.subr.mxu0 0.0
      %261 = vmatpush1.msra.mxu0 0.0
      %262 = vmatprep.subr.mxu0 0.0
      %263 = vmatpush1.msra.mxu0 0.0
      %264 = vmatprep.subr.mxu0 0.0
      %265 = vmatpush1.msra.mxu0 0.0
      %266 = vmatprep.subr.mxu0 0.0
      %267 = vmatpush1.msra.mxu0 0.0
      %268 = vmatprep.subr.mxu0 0.0
      %269 = vmatpush1.msra.mxu0 0.0
      %270 = vmatprep.subr.mxu0 0.0
      %271 = vmatpush1.msra.mxu0 0.0
      %272 = vmatprep.subr.mxu0 0.0
      %273 = vmatpush1.msra.mxu0 0.0
      %274 = vmatprep.subr.mxu0 0.0
      %275 = vmatpush1.msra.mxu0 0.0
      %276 = vmatprep.subr.mxu0 0.0
      %277 = vmatpush1.msra.mxu0 0.0
      %278 = vmatprep.subr.mxu0 0.0
      %279 = vmatpush1.msra.mxu0 0.0
      %280 = vmatprep.subr.mxu0 0.0
      %281 = vmatpush1.msra.mxu0 0.0
      %282 = vmatprep.subr.mxu0 0.0
      %283 = vmatpush1.msra.mxu0 0.0
      %284 = vmatprep.subr.mxu0 0.0
      %285 = vmatpush1.msra.mxu0 0.0
      %286 = vmatprep.subr.mxu0 0.0
      %287 = vmatpush1.msra.mxu0 0.0
      %288 = vmatprep.subr.mxu0 0.0
      %289 = vmatpush1.msra.mxu0 0.0
      %290 = vmatprep.subr.mxu0 0.0
      %291 = vmatpush1.msra.mxu0 0.0
      %292 = vmatprep.subr.mxu0 0.0
      %293 = vmatpush1.msra.mxu0 0.0
      %294 = vmatprep.subr.mxu0 0.0
      %295 = vmatpush1.msra.mxu0 0.0
      %296 = vmatprep.subr.mxu0 0.0
      %297 = vmatpush1.msra.mxu0 0.0
      %298 = vmatprep.subr.mxu0 0.0
      %299 = vmatpush1.msra.mxu0 0.0
      %300 = vmatprep.subr.mxu0 0.0
      %301 = vmatpush1.msra.mxu0 0.0
      %302 = vmatprep.subr.mxu0 0.0
      %303 = vmatpush1.msra.mxu0 0.0
      %304 = vmatprep.subr.mxu0 0.0
      %305 = vmatpush1.msra.mxu0 0.0
      %306 = vmatprep.subr.mxu0 0.0
      %307 = vmatpush1.msra.mxu0 0.0
      %308 = vmatprep.subr.mxu0 0.0
      %309 = vmatpush1.msra.mxu0 0.0
      %310 = vmatprep.subr.mxu0 0.0
      %311 = vmatpush1.msra.mxu0 0.0
      %312 = vmatprep.subr.mxu0 0.0
      %313 = vmatpush1.msra.mxu0 0.0
      %314 = vmatprep.subr.mxu0 0.0
      %315 = vmatpush1.msra.mxu0 0.0
      %316 = vmatprep.mubr.f32.mxu0 0.0
      %317 = vmatmul.mubr.f32.gmra.mrb[0].mxu0 %v245
      %v318 = vpop.f32.mrb[0].mxu0
      %v319 = vadd.f32 0.0, %v318
      %v320 = vpop.f32.mrb[0].mxu0
      %v321 = vadd.f32 0.0, %v320
      %322 = vdwg.mxu0
      %324 = vset.pattern.permute.xlu0 0
      %325 = vperm.xlu0 %324, %v238
      %v326 = vpop.permute.xlu0 %325
      %v328 = vmul.f32 %v319, %v326
      %v329 = vmul.f32 %v321, %v326
      %331 = vset.pattern.permute.xlu0 0
      %332 = vperm.xlu0 %331, %v239
      %v333 = vpop.permute.xlu0 %332
      %v335 = vadd.f32 %v328, %v333
      %v336 = vadd.f32 %v329, %v333
      %v337 = vmax.f32 %v335, 0.0
      %v338 = vmax.f32 %v336, 0.0
      %339 = vst [vmem:[%s235] sm:$0xff] %v337
      %340 = vst [vmem:[%s235 + $0x8] sm:$0xff] %v338
      %s341 = smul.u32 2, %s20
      %p342 = scmp.lt.s32.totalorder %s19, 1
      %s343 = scalar_select %p342, %s19, 1
      %p344 = scmp.lt.s32.totalorder %s341, 1
      %s345 = scalar_select %p344, %s341, 1
      %s346 = smul.addr %s343, 2
      %s347 = sadd.s32 %s345, %s346
      %s348 = smul.addr %s347, 8
      %s349 = scalar_lea.vmem %s4, %s348
      // Predicated region
      $region37: #{_convbnrelu_impl.1} parent=35 // pred_check
        %p350 = pneg %p138
      $region38: #{_convbnrelu_impl.1} parent=35 // pred_check_branch
        %352 = sbr.rel (%p350) target = $region40
      $region39: #{_convbnrelu_impl.1} parent=35 // pred_region
        %s353 = smul.u32 2, %s20
      $region40: #{_convbnrelu_impl.1} parent=35 // pred_fallthru
        _
    $region36: #{_convbnrelu_impl.1} parent=5 // pred_fallthru
      _
    %p354 = scmp.le.s32.totalorder 2, %s10
    // Predicated region
    $region41: #{_convbnrelu_impl.1} parent=5 // pred_check
      %p355 = pneg %p354
    $region42: #{_convbnrelu_impl.1} parent=5 // pred_check_branch
      %357 = sbr.rel (%p355) target = $region44
    $region43: #{_convbnrelu_impl.1} parent=5 // pred_region
      %s358 = ssub.s32 %s10, 2
      // Predicated region
      $region45: #{_convbnrelu_impl.1} parent=43 // pred_check
        %p359 = pneg %p144
      $region46: #{_convbnrelu_impl.1} parent=43 // pred_check_branch
        %361 = sbr.rel (%p359) target = $region48
      $region47: #{_convbnrelu_impl.1} parent=43 // pred_region
        %s362 = smul.u32 2, %s22
        %p363 = scmp.lt.s32.totalorder %s21, 1
        %s364 = scalar_select %p363, %s21, 1
        %p365 = scmp.lt.s32.totalorder %s362, 1
        %s366 = scalar_select %p365, %s362, 1
        %s367 = smul.addr %s364, 2
        %s368 = sadd.s32 %s366, %s367
        %s369 = smul.addr %s368, 8
        %s370 = scalar_lea.vmem %s4, %s369
      $region48: #{_convbnrelu_impl.1} parent=43 // pred_fallthru
        _
    $region44: #{_convbnrelu_impl.1} parent=5 // pred_fallthru
      _
  $region6: #{_convbnrelu_impl.1} parent=0 // loop_footer
    %s14 = sadd.s32 1, %s10
  $region7: #{_convbnrelu_impl.1} parent=0 // loop_footer_branch
    %9 = sbr.rel target = $region3
  $region8: #{_convbnrelu_impl.1} parent=0 // loop_exit
    _

</llo_original>
